<compile_context>
chip_gen: v5e
topology: v5e:2x2
jax: 0.10.0
libtpu: 0.0.40
codegen_flags: <defaults>
</compile_context>

<pallas_src>
import jax
import jax.numpy as jnp
from jax.experimental import pallas as pl
from jax.experimental.pallas import tpu as pltpu


def simple_nn_kernel(xT_ref, w1T_ref, b1_ref, w2T_ref, b2_ref, oT_ref):
    # First linear (transposed): h^T = W1^T @ x^T  -> (H, TB), f32 accumulation.
    h = jnp.dot(w1T_ref[...], xT_ref[...], preferred_element_type=jnp.float32)
    # Bias (H, 1) broadcasts across the lane (batch) axis; ReLU on the VPU.
    h = jnp.maximum(h + b1_ref[...], 0.0)
    # Second linear (transposed): y^T = W2^T @ h^T -> (F_out, TB).
    y = jnp.dot(w2T_ref[...], h.astype(w2T_ref.dtype),
                preferred_element_type=jnp.float32)
    oT_ref[...] = (y + b2_ref[...]).astype(oT_ref.dtype)


def simple_nn_forward(x, w1, b1, w2, b2, *, block_b=512, compute_dtype=jnp.bfloat16):
    """y = relu(x @ w1 + b1) @ w2 + b2, transposed / batch-tiled / lane-dense."""
    B, F_in = x.shape
    H = w1.shape[1]
    F_out = w2.shape[1]

    # Batch tile: lane-aligned (multiple of 128) and no bigger than necessary.
    tb = max(128, min(block_b, pl.next_power_of_2(B)))
    n_tiles = pl.cdiv(B, tb)
    Bp = n_tiles * tb

    # Wrapper-side layout plumbing: batch on the lane axis, bf16 matmul operands
    # for the HBM transfer, biases kept f32 for the epilogue.
    xT = x.astype(compute_dtype).T                                   # (F_in, B)
    if Bp != B:
        xT = jnp.pad(xT, ((0, 0), (0, Bp - B)))                      # (F_in, Bp)
    w1T = w1.T.astype(compute_dtype)                                 # (H, F_in)
    w2T = w2.T.astype(compute_dtype)                                 # (F_out, H)
    b1c = b1.reshape(H, 1).astype(jnp.float32)
    b2c = b2.reshape(F_out, 1).astype(jnp.float32)

    yT = pl.pallas_call(
        simple_nn_kernel,
        out_shape=jax.ShapeDtypeStruct((F_out, Bp), jnp.float32),
        grid=(n_tiles,),
        in_specs=[
            pl.BlockSpec((F_in, tb), lambda i: (0, i)),   # x^T: batch-tiled on lanes
            pl.BlockSpec((H, F_in), lambda i: (0, 0)),    # weights/biases stay resident
            pl.BlockSpec((H, 1), lambda i: (0, 0)),
            pl.BlockSpec((F_out, H), lambda i: (0, 0)),
            pl.BlockSpec((F_out, 1), lambda i: (0, 0)),
        ],
        out_specs=pl.BlockSpec((F_out, tb), lambda i: (0, i)),
        compiler_params=pltpu.CompilerParams(
            dimension_semantics=("parallel",),            # megacore sharding on v7x
        ),
    )(xT, w1T, b1c, w2T, b2c)

    return yT[:, :B].T                                    # back to (B, F_out)


def reference_forward(x, w1, b1, w2, b2):
    h = jnp.maximum(x @ w1 + b1, 0.0)
    return h @ w2 + b2


if __name__ == "__main__":
    key = jax.random.PRNGKey(0)
    k_x, k_w1, k_b1, k_w2, k_b2 = jax.random.split(key, 5)

    B, F_in, H, F_out = 256, 10, 50, 2

    # PyTorch-style uniform(-1/sqrt(fan_in), 1/sqrt(fan_in)) init.
    bound1 = 1.0 / (F_in ** 0.5)
    bound2 = 1.0 / (H ** 0.5)
    w1 = jax.random.uniform(k_w1, (F_in, H), jnp.float32, -bound1, bound1)
    b1 = jax.random.uniform(k_b1, (H,), jnp.float32, -bound1, bound1)
    w2 = jax.random.uniform(k_w2, (H, F_out), jnp.float32, -bound2, bound2)
    b2 = jax.random.uniform(k_b2, (F_out,), jnp.float32, -bound2, bound2)

    x = jax.random.normal(k_x, (B, F_in), jnp.float32)

    # block_b=128 so the batch grid (grid=(2,)) is actually exercised at this size.
    out = simple_nn_forward(x, w1, b1, w2, b2, block_b=128)
    out = jax.block_until_ready(out)
    assert out.shape == (B, F_out)

    # Matched-precision reference: same bf16 operand rounding, f32 accumulation.
    xb, w1b, w2b = (a.astype(jnp.bfloat16) for a in (x, w1, w2))
    h_ref = jnp.maximum(jnp.dot(xb, w1b, preferred_element_type=jnp.float32) + b1, 0.0)
    ref_bf16 = jnp.dot(h_ref.astype(jnp.bfloat16), w2b,
                       preferred_element_type=jnp.float32) + b2
    assert jnp.allclose(out, ref_bf16, atol=1e-3, rtol=1e-3)

    # Full-f32 reference (module semantics) within bf16-transfer tolerance.
    ref_f32 = reference_forward(x, w1, b1, w2, b2)
    assert jnp.allclose(out, ref_f32, atol=2e-2, rtol=2e-2)

    print("KERNEL_OK")
</pallas_src>

<mosaic_0001>
module attributes {stable_mosaic.version = 11 : i64} {
  func.func @simple_nn_kernel(%arg0: i32, %arg1: memref<10x128xbf16, #tpu.memory_space<vmem>>, %arg2: memref<50x10xbf16, #tpu.memory_space<vmem>>, %arg3: memref<50x1xf32, #tpu.memory_space<vmem>>, %arg4: memref<2x50xbf16, #tpu.memory_space<vmem>>, %arg5: memref<2x1xf32, #tpu.memory_space<vmem>>, %arg6: memref<2x128xf32, #tpu.memory_space<vmem>>) attributes {dimension_semantics = [#tpu.dimension_semantics<parallel>], iteration_bounds = array<i64: 2>, scalar_prefetch = 0 : i64, scratch_operands = 0 : i64, tpu.core_type = #tpu.core_type<tc>, window_params = [{transform_indices = @transform_0, window_bounds = array<i64: 10, 128>}, {pipeline_mode = #tpu.pipeline_mode<synchronous>, transform_indices = @transform_1, window_bounds = array<i64: 50, 10>}, {pipeline_mode = #tpu.pipeline_mode<synchronous>, transform_indices = @transform_2, window_bounds = array<i64: 50, 1>}, {pipeline_mode = #tpu.pipeline_mode<synchronous>, transform_indices = @transform_3, window_bounds = array<i64: 2, 50>}, {pipeline_mode = #tpu.pipeline_mode<synchronous>, transform_indices = @transform_4, window_bounds = array<i64: 2, 1>}, {transform_indices = @transform_5, window_bounds = array<i64: 2, 128>}]} {
    %c0 = arith.constant 0 : index
    %c0_0 = arith.constant 0 : index
    %0 = vector.load %arg2[%c0, %c0_0] : memref<50x10xbf16, #tpu.memory_space<vmem>>, vector<50x10xbf16>
    %c0_1 = arith.constant 0 : index
    %c0_2 = arith.constant 0 : index
    %1 = vector.load %arg1[%c0_1, %c0_2] : memref<10x128xbf16, #tpu.memory_space<vmem>>, vector<10x128xbf16>
    %cst = arith.constant dense<0.000000e+00> : vector<50x128xf32>
    %2 = tpu.matmul %0, %1, %cst {dimension_numbers = #tpu.dot_dimension_numbers<[1], [0], [0], [1], [0, 0, 1, 1], [], []>} : vector<50x10xbf16>, vector<10x128xbf16>, vector<50x128xf32> -> vector<50x128xf32>
    %c0_3 = arith.constant 0 : index
    %c0_4 = arith.constant 0 : index
    %3 = vector.load %arg3[%c0_3, %c0_4] : memref<50x1xf32, #tpu.memory_space<vmem>>, vector<50x1xf32>
    %4 = vector.broadcast %3 : vector<50x1xf32> to vector<50x128xf32>
    %5 = arith.addf %2, %4 : vector<50x128xf32>
    %cst_5 = arith.constant 0.000000e+00 : f32
    %6 = vector.broadcast %cst_5 : f32 to vector<50x128xf32>
    %7 = arith.maximumf %5, %6 : vector<50x128xf32>
    %c0_6 = arith.constant 0 : index
    %c0_7 = arith.constant 0 : index
    %8 = vector.load %arg4[%c0_6, %c0_7] : memref<2x50xbf16, #tpu.memory_space<vmem>>, vector<2x50xbf16>
    %9 = arith.truncf %7 : vector<50x128xf32> to vector<50x128xbf16>
    %cst_8 = arith.constant dense<0.000000e+00> : vector<2x128xf32>
    %10 = tpu.matmul %8, %9, %cst_8 {dimension_numbers = #tpu.dot_dimension_numbers<[1], [0], [0], [1], [0, 0, 1, 1], [], []>} : vector<2x50xbf16>, vector<50x128xbf16>, vector<2x128xf32> -> vector<2x128xf32>
    %c0_9 = arith.constant 0 : index
    %c0_10 = arith.constant 0 : index
    %11 = vector.load %arg5[%c0_9, %c0_10] : memref<2x1xf32, #tpu.memory_space<vmem>>, vector<2x1xf32>
    %12 = vector.broadcast %11 : vector<2x1xf32> to vector<2x128xf32>
    %13 = arith.addf %10, %12 : vector<2x128xf32>
    %c0_11 = arith.constant 0 : index
    %c0_12 = arith.constant 0 : index
    %14 = vector.load %arg6[%c0_11, %c0_12] : memref<2x128xf32, #tpu.memory_space<vmem>>, vector<2x128xf32>
    tpu.vector_store %arg6[%c0_11, %c0_12], %13 {strides = array<i32>} : memref<2x128xf32, #tpu.memory_space<vmem>>, vector<2x128xf32>,
    return
  }
  func.func @transform_0(%arg0: i32) -> (i32, i32) {
    %c0_i32 = arith.constant 0 : i32
    %c0_i32_0 = arith.constant 0 : i32
    return %c0_i32, %arg0 : i32, i32
  }
  func.func @transform_1(%arg0: i32) -> (i32, i32) {
    %c0_i32 = arith.constant 0 : i32
    %c0_i32_0 = arith.constant 0 : i32
    %c0_i32_1 = arith.constant 0 : i32
    return %c0_i32, %c0_i32_0 : i32, i32
  }
  func.func @transform_2(%arg0: i32) -> (i32, i32) {
    %c0_i32 = arith.constant 0 : i32
    %c0_i32_0 = arith.constant 0 : i32
    %c0_i32_1 = arith.constant 0 : i32
    return %c0_i32, %c0_i32_0 : i32, i32
  }
  func.func @transform_3(%arg0: i32) -> (i32, i32) {
    %c0_i32 = arith.constant 0 : i32
    %c0_i32_0 = arith.constant 0 : i32
    %c0_i32_1 = arith.constant 0 : i32
    return %c0_i32, %c0_i32_0 : i32, i32
  }
  func.func @transform_4(%arg0: i32) -> (i32, i32) {
    %c0_i32 = arith.constant 0 : i32
    %c0_i32_0 = arith.constant 0 : i32
    %c0_i32_1 = arith.constant 0 : i32
    return %c0_i32, %c0_i32_0 : i32, i32
  }
  func.func @transform_5(%arg0: i32) -> (i32, i32) {
    %c0_i32 = arith.constant 0 : i32
    %c0_i32_0 = arith.constant 0 : i32
    return %c0_i32, %arg0 : i32, i32
  }
}

</mosaic_0001>

<llo_original>
// kernel: tpu_custom_call.1
$region0: #{tpu_custom_call.1}
  #allocation0 [shape = 'u32[]', space=smem, size = 0x4, offset = 0x4, fixed_abs, tag = 'smem constant byte address 0x4 - core index']
  #allocation1 [shape = 'u32[72,128]{1,0:T(1,128)}', space=vmem, size = 0x9000, scoped, tag = 'internal scratch']
  %s0 = inlined_call_operand.vmem [shape: bf16[10,256], index: 0, kind: input, shape index: {}]
  %s1 = inlined_call_operand.vmem [shape: bf16[50,10], index: 1, kind: input, shape index: {}]
  %s2 = inlined_call_operand.vmem [shape: f32[50,1], index: 2, kind: input, shape index: {}]
  %s3 = inlined_call_operand.vmem [shape: bf16[2,50], index: 3, kind: input, shape index: {}]
  %s4 = inlined_call_operand.vmem [shape: f32[2,1], index: 4, kind: input, shape index: {}]
  %s5 = inlined_call_operand.hbm [shape: f32[2,256], index: 5, kind: output, shape index: {}]
  %s6 = sld [smem:[#allocation0]]
  $region94: #{tpu_custom_call.1} parent=0
    _
  %s8 = ssub.s32 1, %s6
  %s9 = scalar_select 0, %s8, %s6
  $region1: #{tpu_custom_call.1} parent=0
    #allocation2 [shape = 'u8[8192]{0}', space=vmem, size = 0x2000, scoped, tag = 'input window, operand 0']
    #allocation3 [shape = 'u8[2048]{0}', space=vmem, size = 0x800, scoped, tag = 'output window, operand 0']
    #allocation4 [shape = 's32[2]{0}', space=sflag, size = 0x8, scoped, tag = 'scoped memory for tpu_custom_call.1']
    %10 = vsyncpa [#allocation4], 0
    %s11 = scalar_lea.sflag [#allocation4], 1
    %12 = vsyncpa %s11, 0
    loop: start=0, step=1, limit=4
    $region2: #{tpu_custom_call.1} parent=1 // loop_pre_header
      _
    $region3: #{tpu_custom_call.1} parent=1 // loop_header
      %s14 = sphi 0, %s18
      %p15 = scmp.ge.s32.totalorder %s14, 4
      %s24 = sphi 0, %s26
      %s27 = sphi 0, %s24
      %s28 = sphi 0, %s27
      %s44 = sphi 0, %s28
      %s48 = sphi 0, %s48
      %s50 = sphi 0, %s48
      %s51 = sphi 0, %s50
      %s65 = sphi 0, %s51
      %s69 = sphi 0, %s69
      %s71 = sphi 0, %s69
      %s72 = sphi 0, %s71
      %s86 = sphi 0, %s72
      %s90 = sphi 0, %s90
      %s92 = sphi 0, %s90
      %s93 = sphi 0, %s92
      %s107 = sphi 0, %s93
      %s111 = sphi 0, %s111
      %s113 = sphi 0, %s111
      %s114 = sphi 0, %s113
      %s128 = sphi 0, %s114
      %s134 = sphi 0, %s136
      %s137 = sphi 0, %s134
      %s138 = sphi 0, %s137
      %s154 = sphi 0, %s138
    $region4: #{tpu_custom_call.1} parent=1 // loop_header_branch
      %17 = sbr.rel (%p15) target = $region8
    $region5: #{tpu_custom_call.1} parent=1 // loop_body
      %s19 = ssub.s32 %s14, 1
      %s20 = ssub.s32 %s14, 2
      %s21 = sadd.s32 %s14, 1
      %s22 = ssub.s32 %s14, %s21
      %p23 = scmp.eq.s32.totalorder %s22, 0
      %s25 = sadd.s32 %s24, 1
      %s26 = scalar_select %p23, %s24, %s25
      %p29 = pneg %p23
      %p30 = scmp.eq.s32.totalorder %s14, 1
      %p31 = por %p29, %p30
      %p32 = scmp.ne.s32.totalorder %s24, %s27
      %p33 = scmp.eq.s32.totalorder %s14, 0
      %p34 = por %p32, %p33
      %p35 = scmp.ne.s32.totalorder %s24, %s27
      %p36 = scmp.eq.s32.totalorder %s19, 1
      %p37 = por %p35, %p36
      %p38 = scmp.ne.s32.totalorder %s27, %s28
      %p39 = scmp.eq.s32.totalorder %s19, 0
      %p40 = por %p38, %p39
      %p41 = scmp.ne.s32.totalorder %s27, %s28
      %p42 = scmp.eq.s32.totalorder %s20, 1
      %p43 = por %p41, %p42
      %p45 = scmp.ne.s32.totalorder %s28, %s44
      %p46 = scmp.eq.s32.totalorder %s20, 0
      %p47 = por %p45, %p46
      %s49 = sadd.s32 %s48, 1
      %p52 = scmp.eq.s32.totalorder %s14, 1
      %p53 = scmp.ne.s32.totalorder %s48, %s50
      %p54 = scmp.eq.s32.totalorder %s14, 0
      %p55 = por %p53, %p54
      %p56 = scmp.ne.s32.totalorder %s48, %s50
      %p57 = scmp.eq.s32.totalorder %s19, 1
      %p58 = por %p56, %p57
      %p59 = scmp.ne.s32.totalorder %s50, %s51
      %p60 = scmp.eq.s32.totalorder %s19, 0
      %p61 = por %p59, %p60
      %p62 = scmp.ne.s32.totalorder %s50, %s51
      %p63 = scmp.eq.s32.totalorder %s20, 1
      %p64 = por %p62, %p63
      %p66 = scmp.ne.s32.totalorder %s51, %s65
      %p67 = scmp.eq.s32.totalorder %s20, 0
      %p68 = por %p66, %p67
      %s70 = sadd.s32 %s69, 1
      %p73 = scmp.eq.s32.totalorder %s14, 1
      %p74 = scmp.ne.s32.totalorder %s69, %s71
      %p75 = scmp.eq.s32.totalorder %s14, 0
      %p76 = por %p74, %p75
      %p77 = scmp.ne.s32.totalorder %s69, %s71
      %p78 = scmp.eq.s32.totalorder %s19, 1
      %p79 = por %p77, %p78
      %p80 = scmp.ne.s32.totalorder %s71, %s72
      %p81 = scmp.eq.s32.totalorder %s19, 0
      %p82 = por %p80, %p81
      %p83 = scmp.ne.s32.totalorder %s71, %s72
      %p84 = scmp.eq.s32.totalorder %s20, 1
      %p85 = por %p83, %p84
      %p87 = scmp.ne.s32.totalorder %s72, %s86
      %p88 = scmp.eq.s32.totalorder %s20, 0
      %p89 = por %p87, %p88
      %s91 = sadd.s32 %s90, 1
      %p94 = scmp.eq.s32.totalorder %s14, 1
      %p95 = scmp.ne.s32.totalorder %s90, %s92
      %p96 = scmp.eq.s32.totalorder %s14, 0
      %p97 = por %p95, %p96
      %p98 = scmp.ne.s32.totalorder %s90, %s92
      %p99 = scmp.eq.s32.totalorder %s19, 1
      %p100 = por %p98, %p99
      %p101 = scmp.ne.s32.totalorder %s92, %s93
      %p102 = scmp.eq.s32.totalorder %s19, 0
      %p103 = por %p101, %p102
      %p104 = scmp.ne.s32.totalorder %s92, %s93
      %p105 = scmp.eq.s32.totalorder %s20, 1
      %p106 = por %p104, %p105
      %p108 = scmp.ne.s32.totalorder %s93, %s107
      %p109 = scmp.eq.s32.totalorder %s20, 0
      %p110 = por %p108, %p109
      %s112 = sadd.s32 %s111, 1
      %p115 = scmp.eq.s32.totalorder %s14, 1
      %p116 = scmp.ne.s32.totalorder %s111, %s113
      %p117 = scmp.eq.s32.totalorder %s14, 0
      %p118 = por %p116, %p117
      %p119 = scmp.ne.s32.totalorder %s111, %s113
      %p120 = scmp.eq.s32.totalorder %s19, 1
      %p121 = por %p119, %p120
      %p122 = scmp.ne.s32.totalorder %s113, %s114
      %p123 = scmp.eq.s32.totalorder %s19, 0
      %p124 = por %p122, %p123
      %p125 = scmp.ne.s32.totalorder %s113, %s114
      %p126 = scmp.eq.s32.totalorder %s20, 1
      %p127 = por %p125, %p126
      %p129 = scmp.ne.s32.totalorder %s114, %s128
      %p130 = scmp.eq.s32.totalorder %s20, 0
      %p131 = por %p129, %p130
      %s132 = ssub.s32 %s14, %s21
      %p133 = scmp.eq.s32.totalorder %s132, 0
      %s135 = sadd.s32 %s134, 1
      %s136 = scalar_select %p133, %s134, %s135
      %p139 = pneg %p133
      %p140 = scmp.eq.s32.totalorder %s14, 1
      %p141 = por %p139, %p140
      %p142 = scmp.ne.s32.totalorder %s134, %s137
      %p143 = scmp.eq.s32.totalorder %s14, 0
      %p144 = por %p142, %p143
      %p145 = scmp.ne.s32.totalorder %s134, %s137
      %p146 = scmp.eq.s32.totalorder %s19, 1
      %p147 = por %p145, %p146
      %p148 = scmp.ne.s32.totalorder %s137, %s138
      %p149 = scmp.eq.s32.totalorder %s19, 0
      %p150 = por %p148, %p149
      %p151 = scmp.ne.s32.totalorder %s137, %s138
      %p152 = scmp.eq.s32.totalorder %s20, 1
      %p153 = por %p151, %p152
      %p155 = scmp.ne.s32.totalorder %s138, %s154
      %p156 = scmp.eq.s32.totalorder %s20, 0
      %p157 = por %p155, %p156
      %p158 = scmp.le.s32.totalorder 1, %s14
      %p159 = scmp.lt.s32.totalorder %s14, 3
      %p160 = pnand %p158, %p159
      %p161 = pneg %p160
      // Predicated region
      $region9: #{tpu_custom_call.1} parent=5 // pred_check
        _
      $region10: #{tpu_custom_call.1} parent=5 // pred_check_branch
        %163 = sbr.rel (%p160) target = $region12
      $region11: #{tpu_custom_call.1} parent=5 // pred_region
        %s164 = ssub.s32 %s14, 1
        // Predicated region
        $region13: #{tpu_custom_call.1} parent=11 // pred_check
          %p165 = pneg %p61
        $region14: #{tpu_custom_call.1} parent=11 // pred_check_branch
          %167 = sbr.rel (%p165) target = $region16
        $region15: #{tpu_custom_call.1} parent=11 // pred_region
          _
        $region16: #{tpu_custom_call.1} parent=11 // pred_fallthru
          _
        // Predicated region
        $region17: #{tpu_custom_call.1} parent=11 // pred_check
          %p168 = pneg %p82
        $region18: #{tpu_custom_call.1} parent=11 // pred_check_branch
          %170 = sbr.rel (%p168) target = $region20
        $region19: #{tpu_custom_call.1} parent=11 // pred_region
          _
        $region20: #{tpu_custom_call.1} parent=11 // pred_fallthru
          _
        // Predicated region
        $region21: #{tpu_custom_call.1} parent=11 // pred_check
          %p171 = pneg %p103
        $region22: #{tpu_custom_call.1} parent=11 // pred_check_branch
          %173 = sbr.rel (%p171) target = $region24
        $region23: #{tpu_custom_call.1} parent=11 // pred_region
          _
        $region24: #{tpu_custom_call.1} parent=11 // pred_fallthru
          _
        // Predicated region
        $region25: #{tpu_custom_call.1} parent=11 // pred_check
          %p174 = pneg %p124
        $region26: #{tpu_custom_call.1} parent=11 // pred_check_branch
          %176 = sbr.rel (%p174) target = $region28
        $region27: #{tpu_custom_call.1} parent=11 // pred_region
          _
        $region28: #{tpu_custom_call.1} parent=11 // pred_fallthru
          _
      $region12: #{tpu_custom_call.1} parent=5 // pred_fallthru
        _
      %p177 = scmp.lt.s32.totalorder %s14, 2
      // Predicated region
      $region29: #{tpu_custom_call.1} parent=5 // pred_check
        %p178 = pneg %p177
      $region30: #{tpu_custom_call.1} parent=5 // pred_check_branch
        %180 = sbr.rel (%p178) target = $region32
      $region31: #{tpu_custom_call.1} parent=5 // pred_region
        // Predicated region
        $region33: #{tpu_custom_call.1} parent=31 // pred_check
          %p181 = pneg %p34
        $region34: #{tpu_custom_call.1} parent=31 // pred_check_branch
          %183 = sbr.rel (%p181) target = $region36
        $region35: #{tpu_custom_call.1} parent=31 // pred_region
          %s184 = sand.u32 %s24, 1
          %s185 = sand.u32 %s24, 1
          %s186 = smul.addr %s185, 8
          %s187 = scalar_lea.vmem [#allocation2], %s186
          %s188 = smul.addr %s14, 4
          %s189 = scalar_lea.vmem %s0, %s188
          // Predicated region
          $region37: #{tpu_custom_call.1} parent=35 // pred_check
            _
          $region38: #{tpu_custom_call.1} parent=35 // pred_check_branch
            %191 = sbr.rel (0) target = $region40
          $region39: #{tpu_custom_call.1} parent=35 // pred_region
            // Predicated region
            $region41: #{tpu_custom_call.1} parent=39 // pred_check
              _
            $region42: #{tpu_custom_call.1} parent=39 // pred_check_branch
              %193 = sbr.rel target = $region44
            $region43: #{tpu_custom_call.1} parent=39 // pred_region
              // Predicated region
              $region56: #{tpu_custom_call.1} parent=43 // pred_check
                _
              $region57: #{tpu_custom_call.1} parent=43 // pred_check_branch
                %211 = sbr.rel (0) target = $region59
              $region58: #{tpu_custom_call.1} parent=43 // pred_region
                loop: start=0, step=1, limit=1
                $region60: #{tpu_custom_call.1} parent=58 // loop_pre_header
                  _
                $region61: #{tpu_custom_call.1} parent=58 // loop_header
                  %s213 = sphi 0, %s217
                  %p214 = scmp.ge.s32.totalorder %s213, 1
                  %s218 = sphi %s189, %s189
                  %s219 = sphi %s187, %s187
                $region62: #{tpu_custom_call.1} parent=58 // loop_header_branch
                  %216 = sbr.rel (%p214) target = $region66
                $region63: #{tpu_custom_call.1} parent=58 // loop_body
                  _
                $region64: #{tpu_custom_call.1} parent=58 // loop_footer
                  %s217 = sadd.s32 1, %s213
                $region65: #{tpu_custom_call.1} parent=58 // loop_footer_branch
                  %212 = sbr.rel target = $region61
                $region66: #{tpu_custom_call.1} parent=58 // loop_exit
                  _
                %s221 = ssub.s32 16, 1
                loop: start=0, step=1, limit=1
                $region67: #{tpu_custom_call.1} parent=58 // loop_pre_header
                  _
                $region68: #{tpu_custom_call.1} parent=58 // loop_header
                  %s223 = sphi 0, %s227
                  %p224 = scmp.ge.s32.totalorder %s223, 1
                  %s228 = sphi %s189, %s189
                  %s229 = sphi %s187, %s187
                $region69: #{tpu_custom_call.1} parent=58 // loop_header_branch
                  %226 = sbr.rel (%p224) target = $region73
                $region70: #{tpu_custom_call.1} parent=58 // loop_body
                  %v230 = vld [vmem:[%s228] sm:%s221]
                  %231 = vst [vmem:[%s229] sm:%s221] %v230
                  %v232 = vld [vmem:[%s228 + $0x8] sm:%s221]
                  %233 = vst [vmem:[%s229 + $0x4] sm:%s221] %v232
                $region71: #{tpu_custom_call.1} parent=58 // loop_footer
                  %s227 = sadd.s32 1, %s223
                $region72: #{tpu_custom_call.1} parent=58 // loop_footer_branch
                  %222 = sbr.rel target = $region68
                $region73: #{tpu_custom_call.1} parent=58 // loop_exit
                  _
              $region59: #{tpu_custom_call.1} parent=43 // pred_fallthru
                _
            $region44: #{tpu_custom_call.1} parent=39 // pred_fallthru
              _
            // Predicated region
            $region45: #{tpu_custom_call.1} parent=39 // pred_check
              _
            $region46: #{tpu_custom_call.1} parent=39 // pred_check_branch
              %195 = sbr.rel (0) target = $region48
            $region47: #{tpu_custom_call.1} parent=39 // pred_region
              %s197 = ssub.s32 16, 1
              loop: start=0, step=1, limit=1
              $region49: #{tpu_custom_call.1} parent=47 // loop_pre_header
                _
              $region50: #{tpu_custom_call.1} parent=47 // loop_header
                %s199 = sphi 0, %s203
                %p200 = scmp.ge.s32.totalorder %s199, 1
                %s204 = sphi %s189, %s189
                %s205 = sphi %s187, %s187
              $region51: #{tpu_custom_call.1} parent=47 // loop_header_branch
                %202 = sbr.rel (%p200) target = $region55
              $region52: #{tpu_custom_call.1} parent=47 // loop_body
                %v206 = vld [vmem:[%s204] sm:%s197]
                %207 = vst [vmem:[%s205] sm:%s197] %v206
                %v208 = vld [vmem:[%s204 + $0x8] sm:%s197]
                %209 = vst [vmem:[%s205 + $0x4] sm:%s197] %v208
              $region53: #{tpu_custom_call.1} parent=47 // loop_footer
                %s203 = sadd.s32 1, %s199
              $region54: #{tpu_custom_call.1} parent=47 // loop_footer_branch
                %198 = sbr.rel target = $region50
              $region55: #{tpu_custom_call.1} parent=47 // loop_exit
                _
            $region48: #{tpu_custom_call.1} parent=39 // pred_fallthru
              _
          $region40: #{tpu_custom_call.1} parent=35 // pred_fallthru
            _
          %234 = vnop
        $region36: #{tpu_custom_call.1} parent=31 // pred_fallthru
          _
      $region32: #{tpu_custom_call.1} parent=5 // pred_fallthru
        _
      %p235 = scmp.le.s32.totalorder 1, %s14
      %p236 = scmp.lt.s32.totalorder %s14, 3
      %p237 = pnand %p235, %p236
      %p238 = pneg %p237
      // Predicated region
      $region74: #{tpu_custom_call.1} parent=5 // pred_check
        _
      $region75: #{tpu_custom_call.1} parent=5 // pred_check_branch
        %240 = sbr.rel (%p237) target = $region77
      $region76: #{tpu_custom_call.1} parent=5 // pred_region
        %s241 = ssub.s32 %s14, 1
        %s242 = sand.u32 %s27, 1
        %s243 = sand.u32 %s27, 1
        %s244 = smul.addr %s243, 8
        %s245 = scalar_lea.vmem [#allocation2], %s244
        // Predicated region
        $region78: #{tpu_custom_call.1} parent=76 // pred_check
          %p246 = pneg %p40
        $region79: #{tpu_custom_call.1} parent=76 // pred_check_branch
          %248 = sbr.rel (%p246) target = $region81
        $region80: #{tpu_custom_call.1} parent=76 // pred_region
          _
        $region81: #{tpu_custom_call.1} parent=76 // pred_fallthru
          _
        %s249 = sand.u32 %s27, 1
        %s250 = sand.u32 %s27, 1
        %s251 = smul.addr %s250, 8
        %s252 = scalar_lea.vmem [#allocation2], %s251
        %p253 = pneg %p40
        %p254 = pneg %p37
        %p255 = pneg %p61
        %p256 = pneg %p58
        %p257 = pneg %p82
        %p258 = pneg %p79
        %p259 = pneg %p103
        %p260 = pneg %p100
        %p261 = pneg %p124
        %p262 = pneg %p121
        %p263 = pneg %p150
        %p264 = pneg %p147
        %s265 = sand.u32 %s137, 1
        %s266 = scalar_lea.sflag [#allocation4], %s265
        %s267 = sand.u32 %s137, 1
        %s268 = smul.addr %s267, 2
        %s269 = scalar_lea.vmem [#allocation3], %s268
        %v271 = vld [vmem:[%s1] sm:$0xf]
        %v272 = vld [vmem:[%s1 + $0x4] sm:$0xf]
        %v273 = vld [vmem:[%s1 + $0x8] sm:$0xf]
        %v274 = vld [vmem:[%s1 + $0xc] sm:$0xf]
        %v275 = vld [vmem:[%s1 + $0x10] sm:$0xf]
        %v276 = vld [vmem:[%s1 + $0x14] sm:$0xf]
        %v277 = vld [vmem:[%s1 + $0x18] sm:$0x1]
        %v278 = vld [vmem:[%s245] sm:$0xf]
        %v279 = vld [vmem:[%s245 + $0x4] sm:$0x1]
        %v280 = vld [vmem:[%s2] sm:$0xff]
        %v281 = vld [vmem:[%s2 + $0x8] sm:$0xff]
        %v282 = vld [vmem:[%s2 + $0x10] sm:$0xff]
        %v283 = vld [vmem:[%s2 + $0x18] sm:$0xff]
        %v284 = vld [vmem:[%s2 + $0x20] sm:$0xff]
        %v285 = vld [vmem:[%s2 + $0x28] sm:$0xff]
        %v286 = vld [vmem:[%s2 + $0x30] sm:$0x3]
        %288 = vset.pattern.permute.xlu0 0
        %289 = vperm.xlu0 %288, %v280
        %v290 = vpop.permute.xlu0 %289
        %293 = vset.pattern.permute.xlu0 0
        %294 = vperm.xlu0 %293, %v281
        %v295 = vpop.permute.xlu0 %294
        %298 = vset.pattern.permute.xlu0 0
        %299 = vperm.xlu0 %298, %v282
        %v300 = vpop.permute.xlu0 %299
        %303 = vset.pattern.permute.xlu0 0
        %304 = vperm.xlu0 %303, %v283
        %v305 = vpop.permute.xlu0 %304
        %308 = vset.pattern.permute.xlu0 0
        %309 = vperm.xlu0 %308, %v284
        %v310 = vpop.permute.xlu0 %309
        %313 = vset.pattern.permute.xlu0 0
        %314 = vperm.xlu0 %313, %v285
        %v315 = vpop.permute.xlu0 %314
        %318 = vset.pattern.permute.xlu0 0
        %319 = vperm.xlu0 %318, %v286
        %v320 = vpop.permute.xlu0 %319
        %v329 = vunpack.c.l.b16 %v271
        %v330 = vunpack.c.l.b16 %v272
        %v331 = vunpack.c.l.b16 %v273
        %v332 = vunpack.c.l.b16 %v274
        %v333 = vunpack.c.l.b16 %v275
        %v334 = vunpack.c.l.b16 %v276
        %v335 = vunpack.c.l.b16 %v277
        %v336 = vpack.c.b16 %v330, %v329
        %v337 = vpack.c.b16 %v332, %v331
        %v338 = vpack.c.b16 %v334, %v333
        %v339 = vpack.c.b16 %v335, %v335
        %v342 = vunpack.c.l.b16 %v278
        %v343 = vunpack.c.l.b16 %v279
        %v344 = vpack.c.b16 %v343, %v342
        %vm345 = vcmask 80896
        %v347 = vsel %vm345, %v336, 0
        %v350 = vsel %vm345, %v337, 0
        %v353 = vsel %vm345, %v338, 0
        %v356 = vsel %vm345, %v339, 0
        %vm358 = vcmask 1044480
        %v360 = vsel %vm358, %v344, 0
        %362 = vmatpush.bf16.msra.mxu0 0
        %363 = vmatpush.bf16.msra.mxu0 0
        %364 = vmatpush.bf16.msra.mxu0 0
        %365 = vmatpush.bf16.msra.mxu0 0
        %366 = vmatpush.bf16.msra.mxu0 0
        %367 = vmatpush.bf16.msra.mxu0 0
        %368 = vmatpush.bf16.msra.mxu0 0
        %369 = vmatpush.bf16.msra.mxu0 %v360
        %370 = vmatmul.bf16.gmra.mxu0 %v347
        %v371 = vpop.f32.mrf.mxu0
        %v372 = vadd.f32 %v290, %v371
        %v373 = vpop.f32.mrf.mxu0
        %v374 = vadd.f32 %v295, %v373
        %375 = vmatmul.bf16.gmra.mxu0 %v350
        %v376 = vpop.f32.mrf.mxu0
        %v377 = vadd.f32 %v300, %v376
        %v378 = vpop.f32.mrf.mxu0
        %v379 = vadd.f32 %v305, %v378
        %380 = vmatmul.bf16.gmra.mxu0 %v353
        %v381 = vpop.f32.mrf.mxu0
        %v382 = vadd.f32 %v310, %v381
        %v383 = vpop.f32.mrf.mxu0
        %v384 = vadd.f32 %v315, %v383
        %385 = vmatmul.bf16.gmra.mxu0 %v356
        %v386 = vpop.f32.mrf.mxu0
        %v387 = vadd.f32 %v320, %v386
        %v388 = vpop.f32.mrf.mxu0
        %389 = vdwg.mxu0
        %v390 = vmax.f32 %v372, 0.0
        %v391 = vmax.f32 %v374, 0.0
        %v392 = vmax.f32 %v377, 0.0
        %v393 = vmax.f32 %v379, 0.0
        %v394 = vmax.f32 %v382, 0.0
        %v395 = vmax.f32 %v384, 0.0
        %v396 = vmax.f32 %v387, 0.0
        %v397 = vld [vmem:[%s3] sm:$0x1]
        %v398 = vpack.c.bf16 %v391, %v390
        %v399 = vpack.c.bf16 %v393, %v392
        %v400 = vpack.c.bf16 %v395, %v394
        %v401 = vpack.c.bf16 %v396, %v396
        %v402 = vld [vmem:[%s4] sm:$0x3]
        %404 = vset.pattern.permute.xlu0 0
        %405 = vperm.xlu0 %404, %v402
        %v406 = vpop.permute.xlu0 %405
        %vm408 = vcmask 408576
        %v410 = vsel %vm408, %v397, 0
        %vm412 = vcmask 1040384
        %v414 = vsel %vm412, %v401, 0
        %416 = vmatpush.bf16.msra.mxu0 0
        %417 = vmatpush.bf16.msra.mxu0 0
        %418 = vmatpush.bf16.msra.mxu0 0
        %419 = vmatpush.bf16.msra.mxu0 0
        %420 = vmatpush.bf16.msra.mxu0 %v414
        %421 = vmatpush.bf16.msra.mxu0 %v400
        %422 = vmatpush.bf16.msra.mxu0 %v399
        %423 = vmatpush.bf16.msra.mxu0 %v398
        %424 = vmatmul.bf16.gmra.mxu0 %v410
        %v425 = vpop.f32.mrf.mxu0
        %v426 = vadd.f32 %v406, %v425
        %v427 = vpop.f32.mrf.mxu0
        %428 = vdwg.mxu0
        %429 = vst [vmem:[%s269] sm:$0x3] %v426
        %s430 = sand.u32 %s137, 1
        %s431 = scalar_lea.sflag [#allocation4], %s430
        %s432 = sand.u32 %s137, 1
        %s433 = smul.addr %s432, 2
        %s434 = scalar_lea.vmem [#allocation3], %s433
        // Predicated region
        $region82: #{tpu_custom_call.1} parent=76 // pred_check
          %p435 = pneg %p147
        $region83: #{tpu_custom_call.1} parent=76 // pred_check_branch
          %437 = sbr.rel (%p435) target = $region85
        $region84: #{tpu_custom_call.1} parent=76 // pred_region
          %439 = vsyncadd %s431, 0
          %s440 = smul.addr %s19, 2
          %s441 = scalar_lea.hbm %s5, %s440
          %s443 = sshll.u32 %s434, 4
          %s444 = int_to_ptr.vmem [resolvable:$true] %s443
          %s445 = sshll.u32 %s441, 4
          %s446 = int_to_ptr.hbm [resolvable:$true] %s445
          %448 = dma.vmem_to_hbm [thread:$0]  %s444, 32, %s446, %s431
        $region85: #{tpu_custom_call.1} parent=76 // pred_fallthru
          _
      $region77: #{tpu_custom_call.1} parent=5 // pred_fallthru
        _
      %p449 = scmp.le.s32.totalorder 2, %s14
      // Predicated region
      $region86: #{tpu_custom_call.1} parent=5 // pred_check
        %p450 = pneg %p449
      $region87: #{tpu_custom_call.1} parent=5 // pred_check_branch
        %452 = sbr.rel (%p450) target = $region89
      $region88: #{tpu_custom_call.1} parent=5 // pred_region
        %s453 = ssub.s32 %s14, 2
        // Predicated region
        $region90: #{tpu_custom_call.1} parent=88 // pred_check
          %p454 = pneg %p153
        $region91: #{tpu_custom_call.1} parent=88 // pred_check_branch
          %456 = sbr.rel (%p454) target = $region93
        $region92: #{tpu_custom_call.1} parent=88 // pred_region
          %s457 = sand.u32 %s138, 1
          %s458 = scalar_lea.sflag [#allocation4], %s457
          %s459 = sand.u32 %s138, 1
          %s460 = smul.addr %s459, 2
          %s461 = scalar_lea.vmem [#allocation3], %s460
          %463 = dma.done %s458, 32
        $region93: #{tpu_custom_call.1} parent=88 // pred_fallthru
          _
      $region89: #{tpu_custom_call.1} parent=5 // pred_fallthru
        _
    $region6: #{tpu_custom_call.1} parent=1 // loop_footer
      %s18 = sadd.s32 1, %s14
    $region7: #{tpu_custom_call.1} parent=1 // loop_footer_branch
      %13 = sbr.rel target = $region3
    $region8: #{tpu_custom_call.1} parent=1 // loop_exit
      _
    %464 = vsyncpa [#allocation4], 1
    %s465 = scalar_lea.sflag [#allocation4], 1
    %466 = vsyncpa %s465, 1

</llo_original>
